<compile_context>
chip_gen: v7x
topology: tpu7x:2x2x1
jax: 0.10.0
libtpu: 0.0.40
codegen_flags: <defaults>
</compile_context>

<pallas_src>
import jax
import jax.numpy as jnp
from jax.experimental import pallas as pl
from jax.experimental.pallas import tpu as pltpu


# ----------------------------------------------------------------------------------
# Path A: lane-dense block-banded kernel (small / moderate W*C)
# ----------------------------------------------------------------------------------
def _banded_weight(w_hwio, cin, cout, K, W):
    """(K,K,Cin,Cout) HWIO conv weights -> (K, W*Cin, W*Cout) block-banded matrices.

    band[kh][wi*Cin + ci, wo*Cout + co] = w_hwio[kh, wi - wo + pad, ci, co]
    when wi - wo + pad in [0, K), else 0.  The 'same' zero padding along W is
    absorbed into the band structure (out-of-range taps simply have no rows).
    """
    pad = (K - 1) // 2
    bands = []
    for kh in range(K):
        acc = jnp.zeros((W * cin, W * cout), jnp.float32)
        for kw in range(K):
            # sel[wi, wo] = 1  iff  wi == wo + kw - pad
            sel = jnp.eye(W, W, k=pad - kw, dtype=jnp.float32)
            acc = acc + jnp.kron(sel, w_hwio[kh, kw].astype(jnp.float32))
        bands.append(acc)
    return jnp.stack(bands, axis=0)


def _make_banded_kernel(nb, H, W, C, Co, K):
    Hp = H + 2
    Mrows = nb * H
    WC, WCo = W * C, W * Co

    def kernel(x_ref, w1_ref, b1_ref, w2_ref, b2_ref, o_ref, xp_ref, mid_ref):
        # x_ref  : (nb, H, WC)       lane-dense input rows
        # w*_ref : (K, W*Cin, W*Cout) block-banded conv weights (one matrix per kh)
        # b*_ref : (1, WCo)          bias tiled across w
        # o_ref  : (nb, H, WCo)
        # xp_ref : (nb, Hp, WC)      VMEM scratch, H-padded input
        # mid_ref: (nb, Hp, WCo)     VMEM scratch, H-padded ReLU(conv1)

        # Zero only the top/bottom padded rows (the W-axis padding lives inside the
        # banded weights).  Done every iteration (not @pl.when(pid==0)) so it stays
        # correct when the batch axis is sharded across TensorCores ("parallel").
        xp_ref[:, 0:1, :] = jnp.zeros((nb, 1, WC), jnp.float32)
        xp_ref[:, Hp - 1:Hp, :] = jnp.zeros((nb, 1, WC), jnp.float32)
        mid_ref[:, 0:1, :] = jnp.zeros((nb, 1, WCo), jnp.float32)
        mid_ref[:, Hp - 1:Hp, :] = jnp.zeros((nb, 1, WCo), jnp.float32)

        x = x_ref[...].astype(jnp.float32)                       # (nb, H, WC)
        xp_ref[:, 1:H + 1, :] = x

        # ---- conv1 (+ bias + ReLU): K row-shifted banded MXU matmuls ----
        y1 = jnp.zeros((Mrows, WCo), jnp.float32)
        for kh in range(K):
            lhs = xp_ref[:, kh:kh + H, :].reshape(Mrows, WC)
            y1 = y1 + jnp.dot(lhs, w1_ref[kh], preferred_element_type=jnp.float32)
        y1 = jnp.maximum(y1 + b1_ref[...], 0.0)

        # Stage the H-padded intermediate so conv2 sees correct top/bottom borders.
        mid_ref[:, 1:H + 1, :] = y1.reshape(nb, H, WCo)

        # ---- conv2 (+ bias) ----
        y2 = jnp.zeros((Mrows, WCo), jnp.float32)
        for kh in range(K):
            lhs = mid_ref[:, kh:kh + H, :].reshape(Mrows, WCo)
            y2 = y2 + jnp.dot(lhs, w2_ref[kh], preferred_element_type=jnp.float32)
        y2 = y2 + b2_ref[...]

        # residual add (the PyTorch `out * 1.0` is a no-op and is folded away)
        out = y2 + x.reshape(Mrows, WC)
        o_ref[...] = out.reshape(nb, H, WCo).astype(o_ref.dtype)

    return kernel


# ----------------------------------------------------------------------------------
# Path B: fused-tap im2col kernel (large channel counts; proven previous version)
# ----------------------------------------------------------------------------------
def _make_im2col_kernel(nb, H, W, C, Co, K):
    Hp, Wp = H + 2, W + 2
    M = nb * H * W

    def kernel(x_ref, w1_ref, b1_ref, w2_ref, b2_ref, o_ref, xp_ref, mid_ref):
        def zero_halo(ref, c):
            ref[:, 0:1, :, :] = jnp.zeros((nb, 1, Wp, c), jnp.float32)
            ref[:, Hp - 1:Hp, :, :] = jnp.zeros((nb, 1, Wp, c), jnp.float32)
            ref[:, :, 0:1, :] = jnp.zeros((nb, Hp, 1, c), jnp.float32)
            ref[:, :, Wp - 1:Wp, :] = jnp.zeros((nb, Hp, 1, c), jnp.float32)

        zero_halo(xp_ref, C)
        zero_halo(mid_ref, Co)

        x = x_ref[...].astype(jnp.float32)                       # (nb, H, W, C)
        xp_ref[:, 1:H + 1, 1:W + 1, :] = x
        xp = xp_ref[...]

        slab1 = jnp.concatenate(
            [xp[:, kh:kh + H, kw:kw + W, :].reshape(M, C)
             for kh in range(K) for kw in range(K)], axis=-1)
        y1 = jnp.dot(slab1, w1_ref[...], preferred_element_type=jnp.float32)
        y1 = jnp.maximum(y1 + b1_ref[...], 0.0)

        mid_ref[:, 1:H + 1, 1:W + 1, :] = y1.reshape(nb, H, W, Co)
        mid = mid_ref[...]

        slab2 = jnp.concatenate(
            [mid[:, kh:kh + H, kw:kw + W, :].reshape(M, Co)
             for kh in range(K) for kw in range(K)], axis=-1)
        y2 = jnp.dot(slab2, w2_ref[...], preferred_element_type=jnp.float32)
        y2 = y2 + b2_ref[...]

        out = y2 + x.reshape(M, C)
        o_ref[...] = out.reshape(nb, H, W, Co).astype(o_ref.dtype)

    return kernel


# ----------------------------------------------------------------------------------
# Wrapper
# ----------------------------------------------------------------------------------
def residual_block(x_nchw, w1_oihw, b1, w2_oihw, b2,
                   *, vmem_budget_bytes=8 * 1024 * 1024):
    """Forward pass matching the PyTorch ResidualBlock. x_nchw: (N, C, H, W)."""
    N, C, H, W = x_nchw.shape
    Co, Ci, K, K2 = w1_oihw.shape
    assert K == K2 == 3 and Co == C and Ci == C, \
        "kernel supports the module defaults: 3x3 / stride 1 / pad 1, Cin == Cout"
    Hp, Wp = H + 2, W + 2

    # Boundary glue (layout plumbing in XLA, outside the kernel).
    x_nhwc = jnp.transpose(x_nchw, (0, 2, 3, 1))
    w1_hwio = jnp.transpose(w1_oihw, (2, 3, 1, 0))
    w2_hwio = jnp.transpose(w2_oihw, (2, 3, 1, 0))

    band_bytes = 2 * K * (W * C) * (W * Co) * 4
    use_banded = (W * C <= 1024) and (W * Co <= 1024) and band_bytes <= 8 * 1024 * 1024

    par = pltpu.CompilerParams(dimension_semantics=("parallel",))

    if use_banded:
        # --- lane-dense block-banded path ---
        x_rows = x_nhwc.reshape(N, H, W * C)                 # free dim-merge reshape
        w1b = _banded_weight(w1_hwio, C, Co, K, W)           # (K, W*C, W*Co)
        w2b = _banded_weight(w2_hwio, Co, Co, K, W)          # (K, W*Co, W*Co)
        b1r = jnp.tile(b1, W).reshape(1, W * Co)
        b2r = jnp.tile(b2, W).reshape(1, W * Co)

        bytes_per_sample = 4 * (2 * H * W * C + 2 * H * W * Co     # dbl-buffered in/out
                                + Hp * W * C + Hp * W * Co         # padded scratch
                                + 4 * H * W * Co)                  # live temporaries
        fixed_bytes = 2 * band_bytes + 8 * 2 * W * Co              # weights + biases
        nb = 1
        for cand in range(N, 0, -1):
            if N % cand == 0 and fixed_bytes + cand * bytes_per_sample <= vmem_budget_bytes:
                nb = cand
                break

        kernel = _make_banded_kernel(nb, H, W, C, Co, K)
        out_rows = pl.pallas_call(
            kernel,
            out_shape=jax.ShapeDtypeStruct((N, H, W * Co), x_nchw.dtype),
            grid_spec=pltpu.PrefetchScalarGridSpec(
                num_scalar_prefetch=0,
                grid=(N // nb,),
                in_specs=[
                    pl.BlockSpec((nb, H, W * C), lambda n: (n, 0, 0)),
                    pl.BlockSpec((K, W * C, W * Co), lambda n: (0, 0, 0)),
                    pl.BlockSpec((1, W * Co), lambda n: (0, 0)),
                    pl.BlockSpec((K, W * Co, W * Co), lambda n: (0, 0, 0)),
                    pl.BlockSpec((1, W * Co), lambda n: (0, 0)),
                ],
                out_specs=pl.BlockSpec((nb, H, W * Co), lambda n: (n, 0, 0)),
                scratch_shapes=[
                    pltpu.VMEM((nb, Hp, W * C), jnp.float32),    # H-padded input
                    pltpu.VMEM((nb, Hp, W * Co), jnp.float32),   # H-padded ReLU(conv1)
                ],
            ),
            compiler_params=par,
        )(x_rows, w1b, b1r, w2b, b2r)
        out_nhwc = out_rows.reshape(N, H, W, Co)
    else:
        # --- fused-tap im2col path for large channel counts ---
        w1 = w1_hwio.reshape(K * K * Ci, Co)
        w2 = w2_hwio.reshape(K * K * Co, Co)
        b1_2d = b1.reshape(1, Co)
        b2_2d = b2.reshape(1, Co)

        bytes_per_elem = 4 * (Hp * Wp * (C + Co)
                              + 2 * H * W * (C + Co)
                              + 4 * H * W * K * K * C)
        nb = 1
        for cand in range(N, 0, -1):
            if N % cand == 0 and cand * bytes_per_elem <= vmem_budget_bytes:
                nb = cand
                break

        kernel = _make_im2col_kernel(nb, H, W, C, Co, K)
        out_nhwc = pl.pallas_call(
            kernel,
            out_shape=jax.ShapeDtypeStruct((N, H, W, Co), x_nchw.dtype),
            grid_spec=pltpu.PrefetchScalarGridSpec(
                num_scalar_prefetch=0,
                grid=(N // nb,),
                in_specs=[
                    pl.BlockSpec((nb, H, W, C), lambda n: (n, 0, 0, 0)),
                    pl.BlockSpec((K * K * Ci, Co), lambda n: (0, 0)),
                    pl.BlockSpec((1, Co), lambda n: (0, 0)),
                    pl.BlockSpec((K * K * Co, Co), lambda n: (0, 0)),
                    pl.BlockSpec((1, Co), lambda n: (0, 0)),
                ],
                out_specs=pl.BlockSpec((nb, H, W, Co), lambda n: (n, 0, 0, 0)),
                scratch_shapes=[
                    pltpu.VMEM((nb, Hp, Wp, C), jnp.float32),
                    pltpu.VMEM((nb, Hp, Wp, Co), jnp.float32),
                ],
            ),
            compiler_params=par,
        )(x_nhwc, w1, b1_2d, w2, b2_2d)

    return jnp.transpose(out_nhwc, (0, 3, 1, 2))


def ref_residual_block(x, w1, b1, w2, b2):
    """Pure-JAX reference mirroring the PyTorch forward (NCHW / OIHW)."""
    dn = ('NCHW', 'OIHW', 'NCHW')
    y = jax.lax.conv_general_dilated(x, w1, (1, 1), ((1, 1), (1, 1)),
                                     dimension_numbers=dn)
    y = y + b1[None, :, None, None]
    y = jnp.maximum(y, 0.0)
    y = jax.lax.conv_general_dilated(y, w2, (1, 1), ((1, 1), (1, 1)),
                                     dimension_numbers=dn)
    y = y + b2[None, :, None, None]
    y = y * 1.0
    return y + x


if __name__ == "__main__":
    key = jax.random.PRNGKey(0)
    kx, k1, kb1, k2, kb2 = jax.random.split(key, 5)
    N, C, H, W, K = 2, 4, 16, 16, 3

    x = jax.random.normal(kx, (N, C, H, W), jnp.float32)
    w1 = jax.random.normal(k1, (C, C, K, K), jnp.float32) * 0.1
    b1 = jax.random.normal(kb1, (C,), jnp.float32) * 0.1
    w2 = jax.random.normal(k2, (C, C, K, K), jnp.float32) * 0.1
    b2 = jax.random.normal(kb2, (C,), jnp.float32) * 0.1

    out = jax.block_until_ready(residual_block(x, w1, b1, w2, b2))
    ref = ref_residual_block(x, w1, b1, w2, b2)

    assert out.shape == (N, C, H, W) and out.dtype == jnp.float32
    assert jnp.allclose(out, ref, atol=1e-4, rtol=1e-4), "Pallas kernel mismatch vs reference"

    print("KERNEL_OK")
</pallas_src>

<mosaic_0001>
module attributes {stable_mosaic.version = 11 : i64} {
  func.func @kernel(%arg0: i32, %arg1: memref<2x16x64xf32, #tpu.memory_space<vmem>>, %arg2: memref<3x64x64xf32, #tpu.memory_space<vmem>>, %arg3: memref<1x64xf32, #tpu.memory_space<vmem>>, %arg4: memref<3x64x64xf32, #tpu.memory_space<vmem>>, %arg5: memref<1x64xf32, #tpu.memory_space<vmem>>, %arg6: memref<2x16x64xf32, #tpu.memory_space<vmem>>, %arg7: memref<2x18x64xf32, #tpu.memory_space<vmem>>, %arg8: memref<2x18x64xf32, #tpu.memory_space<vmem>>) attributes {dimension_semantics = [#tpu.dimension_semantics<parallel>], iteration_bounds = array<i64: 1>, scalar_prefetch = 0 : i64, scratch_operands = 2 : i64, tpu.core_type = #tpu.core_type<tc>, window_params = [{transform_indices = @transform_0, window_bounds = array<i64: 2, 16, 64>}, {pipeline_mode = #tpu.pipeline_mode<synchronous>, transform_indices = @transform_1, window_bounds = array<i64: 3, 64, 64>}, {pipeline_mode = #tpu.pipeline_mode<synchronous>, transform_indices = @transform_2, window_bounds = array<i64: 1, 64>}, {pipeline_mode = #tpu.pipeline_mode<synchronous>, transform_indices = @transform_3, window_bounds = array<i64: 3, 64, 64>}, {pipeline_mode = #tpu.pipeline_mode<synchronous>, transform_indices = @transform_4, window_bounds = array<i64: 1, 64>}, {transform_indices = @transform_5, window_bounds = array<i64: 2, 16, 64>}]} {
    %cst = arith.constant 0.000000e+00 : f32
    %0 = vector.broadcast %cst : f32 to vector<2x1x64xf32>
    %c0 = arith.constant 0 : index
    %c0_0 = arith.constant 0 : index
    %c0_1 = arith.constant 0 : index
    %1 = vector.load %arg7[%c0, %c0_0, %c0_1] : memref<2x18x64xf32, #tpu.memory_space<vmem>>, vector<2x1x64xf32>
    tpu.vector_store %arg7[%c0, %c0_0, %c0_1], %0 {strides = array<i32>} : memref<2x18x64xf32, #tpu.memory_space<vmem>>, vector<2x1x64xf32>,
    %cst_2 = arith.constant 0.000000e+00 : f32
    %2 = vector.broadcast %cst_2 : f32 to vector<2x1x64xf32>
    %c0_3 = arith.constant 0 : index
    %c17 = arith.constant 17 : index
    %c0_4 = arith.constant 0 : index
    %3 = vector.load %arg7[%c0_3, %c17, %c0_4] : memref<2x18x64xf32, #tpu.memory_space<vmem>>, vector<2x1x64xf32>
    tpu.vector_store %arg7[%c0_3, %c17, %c0_4], %2 {strides = array<i32>} : memref<2x18x64xf32, #tpu.memory_space<vmem>>, vector<2x1x64xf32>,
    %cst_5 = arith.constant 0.000000e+00 : f32
    %4 = vector.broadcast %cst_5 : f32 to vector<2x1x64xf32>
    %c0_6 = arith.constant 0 : index
    %c0_7 = arith.constant 0 : index
    %c0_8 = arith.constant 0 : index
    %5 = vector.load %arg8[%c0_6, %c0_7, %c0_8] : memref<2x18x64xf32, #tpu.memory_space<vmem>>, vector<2x1x64xf32>
    tpu.vector_store %arg8[%c0_6, %c0_7, %c0_8], %4 {strides = array<i32>} : memref<2x18x64xf32, #tpu.memory_space<vmem>>, vector<2x1x64xf32>,
    %cst_9 = arith.constant 0.000000e+00 : f32
    %6 = vector.broadcast %cst_9 : f32 to vector<2x1x64xf32>
    %c0_10 = arith.constant 0 : index
    %c17_11 = arith.constant 17 : index
    %c0_12 = arith.constant 0 : index
    %7 = vector.load %arg8[%c0_10, %c17_11, %c0_12] : memref<2x18x64xf32, #tpu.memory_space<vmem>>, vector<2x1x64xf32>
    tpu.vector_store %arg8[%c0_10, %c17_11, %c0_12], %6 {strides = array<i32>} : memref<2x18x64xf32, #tpu.memory_space<vmem>>, vector<2x1x64xf32>,
    %c0_13 = arith.constant 0 : index
    %c0_14 = arith.constant 0 : index
    %c0_15 = arith.constant 0 : index
    %8 = vector.load %arg1[%c0_13, %c0_14, %c0_15] : memref<2x16x64xf32, #tpu.memory_space<vmem>>, vector<2x16x64xf32>
    %c0_16 = arith.constant 0 : index
    %c1 = arith.constant 1 : index
    %c0_17 = arith.constant 0 : index
    %9 = vector.load %arg7[%c0_16, %c1, %c0_17] : memref<2x18x64xf32, #tpu.memory_space<vmem>>, vector<2x16x64xf32>
    tpu.vector_store %arg7[%c0_16, %c1, %c0_17], %8 {strides = array<i32>} : memref<2x18x64xf32, #tpu.memory_space<vmem>>, vector<2x16x64xf32>,
    %cst_18 = arith.constant 0.000000e+00 : f32
    %10 = vector.broadcast %cst_18 : f32 to vector<32x64xf32>
    %c0_19 = arith.constant 0 : index
    %c0_20 = arith.constant 0 : index
    %c0_21 = arith.constant 0 : index
    %11 = vector.load %arg7[%c0_19, %c0_20, %c0_21] : memref<2x18x64xf32, #tpu.memory_space<vmem>>, vector<2x16x64xf32>
    %12 = vector.shape_cast %11 : vector<2x16x64xf32> to vector<32x64xf32>
    %c0_22 = arith.constant 0 : index
    %c0_23 = arith.constant 0 : index
    %c0_24 = arith.constant 0 : index
    %13 = vector.load %arg2[%c0_22, %c0_23, %c0_24] : memref<3x64x64xf32, #tpu.memory_space<vmem>>, vector<1x64x64xf32>
    %14 = vector.shape_cast %13 : vector<1x64x64xf32> to vector<64x64xf32>
    %cst_25 = arith.constant dense<0.000000e+00> : vector<32x64xf32>
    %15 = tpu.matmul %12, %14, %cst_25 {dimension_numbers = #tpu.dot_dimension_numbers<[1], [0], [0], [1], [0, 0, 1, 1], [], []>} : vector<32x64xf32>, vector<64x64xf32>, vector<32x64xf32> -> vector<32x64xf32>
    %16 = arith.addf %10, %15 : vector<32x64xf32>
    %c0_26 = arith.constant 0 : index
    %c1_27 = arith.constant 1 : index
    %c0_28 = arith.constant 0 : index
    %17 = vector.load %arg7[%c0_26, %c1_27, %c0_28] : memref<2x18x64xf32, #tpu.memory_space<vmem>>, vector<2x16x64xf32>
    %18 = vector.shape_cast %17 : vector<2x16x64xf32> to vector<32x64xf32>
    %c1_29 = arith.constant 1 : index
    %c0_30 = arith.constant 0 : index
    %c0_31 = arith.constant 0 : index
    %19 = vector.load %arg2[%c1_29, %c0_30, %c0_31] : memref<3x64x64xf32, #tpu.memory_space<vmem>>, vector<1x64x64xf32>
    %20 = vector.shape_cast %19 : vector<1x64x64xf32> to vector<64x64xf32>
    %cst_32 = arith.constant dense<0.000000e+00> : vector<32x64xf32>
    %21 = tpu.matmul %18, %20, %cst_32 {dimension_numbers = #tpu.dot_dimension_numbers<[1], [0], [0], [1], [0, 0, 1, 1], [], []>} : vector<32x64xf32>, vector<64x64xf32>, vector<32x64xf32> -> vector<32x64xf32>
    %22 = arith.addf %16, %21 : vector<32x64xf32>
    %c0_33 = arith.constant 0 : index
    %c2 = arith.constant 2 : index
    %c0_34 = arith.constant 0 : index
    %23 = vector.load %arg7[%c0_33, %c2, %c0_34] : memref<2x18x64xf32, #tpu.memory_space<vmem>>, vector<2x16x64xf32>
    %24 = vector.shape_cast %23 : vector<2x16x64xf32> to vector<32x64xf32>
    %c2_35 = arith.constant 2 : index
    %c0_36 = arith.constant 0 : index
    %c0_37 = arith.constant 0 : index
    %25 = vector.load %arg2[%c2_35, %c0_36, %c0_37] : memref<3x64x64xf32, #tpu.memory_space<vmem>>, vector<1x64x64xf32>
    %26 = vector.shape_cast %25 : vector<1x64x64xf32> to vector<64x64xf32>
    %cst_38 = arith.constant dense<0.000000e+00> : vector<32x64xf32>
    %27 = tpu.matmul %24, %26, %cst_38 {dimension_numbers = #tpu.dot_dimension_numbers<[1], [0], [0], [1], [0, 0, 1, 1], [], []>} : vector<32x64xf32>, vector<64x64xf32>, vector<32x64xf32> -> vector<32x64xf32>
    %28 = arith.addf %22, %27 : vector<32x64xf32>
    %c0_39 = arith.constant 0 : index
    %c0_40 = arith.constant 0 : index
    %29 = vector.load %arg3[%c0_39, %c0_40] : memref<1x64xf32, #tpu.memory_space<vmem>>, vector<1x64xf32>
    %30 = vector.broadcast %29 : vector<1x64xf32> to vector<32x64xf32>
    %31 = arith.addf %28, %30 : vector<32x64xf32>
    %cst_41 = arith.constant 0.000000e+00 : f32
    %32 = vector.broadcast %cst_41 : f32 to vector<32x64xf32>
    %33 = arith.maximumf %31, %32 : vector<32x64xf32>
    %34 = vector.shape_cast %33 : vector<32x64xf32> to vector<2x16x64xf32>
    %c0_42 = arith.constant 0 : index
    %c1_43 = arith.constant 1 : index
    %c0_44 = arith.constant 0 : index
    %35 = vector.load %arg8[%c0_42, %c1_43, %c0_44] : memref<2x18x64xf32, #tpu.memory_space<vmem>>, vector<2x16x64xf32>
    tpu.vector_store %arg8[%c0_42, %c1_43, %c0_44], %34 {strides = array<i32>} : memref<2x18x64xf32, #tpu.memory_space<vmem>>, vector<2x16x64xf32>,
    %cst_45 = arith.constant 0.000000e+00 : f32
    %36 = vector.broadcast %cst_45 : f32 to vector<32x64xf32>
    %c0_46 = arith.constant 0 : index
    %c0_47 = arith.constant 0 : index
    %c0_48 = arith.constant 0 : index
    %37 = vector.load %arg8[%c0_46, %c0_47, %c0_48] : memref<2x18x64xf32, #tpu.memory_space<vmem>>, vector<2x16x64xf32>
    %38 = vector.shape_cast %37 : vector<2x16x64xf32> to vector<32x64xf32>
    %c0_49 = arith.constant 0 : index
    %c0_50 = arith.constant 0 : index
    %c0_51 = arith.constant 0 : index
    %39 = vector.load %arg4[%c0_49, %c0_50, %c0_51] : memref<3x64x64xf32, #tpu.memory_space<vmem>>, vector<1x64x64xf32>
    %40 = vector.shape_cast %39 : vector<1x64x64xf32> to vector<64x64xf32>
    %cst_52 = arith.constant dense<0.000000e+00> : vector<32x64xf32>
    %41 = tpu.matmul %38, %40, %cst_52 {dimension_numbers = #tpu.dot_dimension_numbers<[1], [0], [0], [1], [0, 0, 1, 1], [], []>} : vector<32x64xf32>, vector<64x64xf32>, vector<32x64xf32> -> vector<32x64xf32>
    %42 = arith.addf %36, %41 : vector<32x64xf32>
    %c0_53 = arith.constant 0 : index
    %c1_54 = arith.constant 1 : index
    %c0_55 = arith.constant 0 : index
    %43 = vector.load %arg8[%c0_53, %c1_54, %c0_55] : memref<2x18x64xf32, #tpu.memory_space<vmem>>, vector<2x16x64xf32>
    %44 = vector.shape_cast %43 : vector<2x16x64xf32> to vector<32x64xf32>
    %c1_56 = arith.constant 1 : index
    %c0_57 = arith.constant 0 : index
    %c0_58 = arith.constant 0 : index
    %45 = vector.load %arg4[%c1_56, %c0_57, %c0_58] : memref<3x64x64xf32, #tpu.memory_space<vmem>>, vector<1x64x64xf32>
    %46 = vector.shape_cast %45 : vector<1x64x64xf32> to vector<64x64xf32>
    %cst_59 = arith.constant dense<0.000000e+00> : vector<32x64xf32>
    %47 = tpu.matmul %44, %46, %cst_59 {dimension_numbers = #tpu.dot_dimension_numbers<[1], [0], [0], [1], [0, 0, 1, 1], [], []>} : vector<32x64xf32>, vector<64x64xf32>, vector<32x64xf32> -> vector<32x64xf32>
    %48 = arith.addf %42, %47 : vector<32x64xf32>
    %c0_60 = arith.constant 0 : index
    %c2_61 = arith.constant 2 : index
    %c0_62 = arith.constant 0 : index
    %49 = vector.load %arg8[%c0_60, %c2_61, %c0_62] : memref<2x18x64xf32, #tpu.memory_space<vmem>>, vector<2x16x64xf32>
    %50 = vector.shape_cast %49 : vector<2x16x64xf32> to vector<32x64xf32>
    %c2_63 = arith.constant 2 : index
    %c0_64 = arith.constant 0 : index
    %c0_65 = arith.constant 0 : index
    %51 = vector.load %arg4[%c2_63, %c0_64, %c0_65] : memref<3x64x64xf32, #tpu.memory_space<vmem>>, vector<1x64x64xf32>
    %52 = vector.shape_cast %51 : vector<1x64x64xf32> to vector<64x64xf32>
    %cst_66 = arith.constant dense<0.000000e+00> : vector<32x64xf32>
    %53 = tpu.matmul %50, %52, %cst_66 {dimension_numbers = #tpu.dot_dimension_numbers<[1], [0], [0], [1], [0, 0, 1, 1], [], []>} : vector<32x64xf32>, vector<64x64xf32>, vector<32x64xf32> -> vector<32x64xf32>
    %54 = arith.addf %48, %53 : vector<32x64xf32>
    %c0_67 = arith.constant 0 : index
    %c0_68 = arith.constant 0 : index
    %55 = vector.load %arg5[%c0_67, %c0_68] : memref<1x64xf32, #tpu.memory_space<vmem>>, vector<1x64xf32>
    %56 = vector.broadcast %55 : vector<1x64xf32> to vector<32x64xf32>
    %57 = arith.addf %54, %56 : vector<32x64xf32>
    %58 = vector.shape_cast %8 : vector<2x16x64xf32> to vector<32x64xf32>
    %59 = arith.addf %57, %58 : vector<32x64xf32>
    %60 = vector.shape_cast %59 : vector<32x64xf32> to vector<2x16x64xf32>
    %c0_69 = arith.constant 0 : index
    %c0_70 = arith.constant 0 : index
    %c0_71 = arith.constant 0 : index
    %61 = vector.load %arg6[%c0_69, %c0_70, %c0_71] : memref<2x16x64xf32, #tpu.memory_space<vmem>>, vector<2x16x64xf32>
    tpu.vector_store %arg6[%c0_69, %c0_70, %c0_71], %60 {strides = array<i32>} : memref<2x16x64xf32, #tpu.memory_space<vmem>>, vector<2x16x64xf32>,
    return
  }
  func.func @transform_0(%arg0: i32) -> (i32, i32, i32) {
    %c0_i32 = arith.constant 0 : i32
    %c0_i32_0 = arith.constant 0 : i32
    %c0_i32_1 = arith.constant 0 : i32
    return %arg0, %c0_i32, %c0_i32_0 : i32, i32, i32
  }
  func.func @transform_1(%arg0: i32) -> (i32, i32, i32) {
    %c0_i32 = arith.constant 0 : i32
    %c0_i32_0 = arith.constant 0 : i32
    %c0_i32_1 = arith.constant 0 : i32
    %c0_i32_2 = arith.constant 0 : i32
    return %c0_i32, %c0_i32_0, %c0_i32_1 : i32, i32, i32
  }
  func.func @transform_2(%arg0: i32) -> (i32, i32) {
    %c0_i32 = arith.constant 0 : i32
    %c0_i32_0 = arith.constant 0 : i32
    %c0_i32_1 = arith.constant 0 : i32
    return %c0_i32, %c0_i32_0 : i32, i32
  }
  func.func @transform_3(%arg0: i32) -> (i32, i32, i32) {
    %c0_i32 = arith.constant 0 : i32
    %c0_i32_0 = arith.constant 0 : i32
    %c0_i32_1 = arith.constant 0 : i32
    %c0_i32_2 = arith.constant 0 : i32
    return %c0_i32, %c0_i32_0, %c0_i32_1 : i32, i32, i32
  }
  func.func @transform_4(%arg0: i32) -> (i32, i32) {
    %c0_i32 = arith.constant 0 : i32
    %c0_i32_0 = arith.constant 0 : i32
    %c0_i32_1 = arith.constant 0 : i32
    return %c0_i32, %c0_i32_0 : i32, i32
  }
  func.func @transform_5(%arg0: i32) -> (i32, i32, i32) {
    %c0_i32 = arith.constant 0 : i32
    %c0_i32_0 = arith.constant 0 : i32
    %c0_i32_1 = arith.constant 0 : i32
    return %arg0, %c0_i32, %c0_i32_0 : i32, i32, i32
  }
}

</mosaic_0001>

<llo_original>
// kernel: tpu_custom_call.1
$region0: #{tpu_custom_call.1}
  #allocation0 [shape = 'u32[]', space=smem, size = 0x4, offset = 0x4, fixed_abs, tag = 'smem constant byte address 0x4 - core index']
  #allocation1 [shape = 'u32[144,128]{1,0:T(1,128)}', space=vmem, size = 0x12000, scoped, tag = 'internal scratch']
  #allocation2 [shape = 'f32[2,18,64]{2,1,0:T(8,128)}', space=vmem, size = 0x6000, scoped, tag = 'scratch operand']
  #allocation3 [shape = 'f32[2,18,64]{2,1,0:T(8,128)}', space=vmem, size = 0x6000, scoped, tag = 'scratch operand']
  %s0 = inlined_call_operand.hbm [shape: f32[2,16,64], index: 0, kind: input, shape index: {}]
  %s1 = inlined_call_operand.hbm [shape: f32[3,64,64], index: 1, kind: input, shape index: {}]
  %s2 = inlined_call_operand.vmem [shape: f32[1,64], index: 2, kind: input, shape index: {}]
  %s3 = inlined_call_operand.hbm [shape: f32[3,64,64], index: 3, kind: input, shape index: {}]
  %s4 = inlined_call_operand.vmem [shape: f32[1,64], index: 4, kind: input, shape index: {}]
  %s5 = inlined_call_operand.hbm [shape: f32[2,16,64], index: 5, kind: output, shape index: {}]
  %s6 = sld [smem:[#allocation0]]
  $region42: #{tpu_custom_call.1} parent=0
    _
  %s8 = ssub.s32 1, %s6
  %s9 = scalar_select 0, %s8, %s6
  $region1: #{tpu_custom_call.1} parent=0
    #allocation4 [shape = 'u8[16384]{0}', space=vmem, size = 0x4000, scoped, tag = 'input window, operand 0, single buffered']
    #allocation5 [shape = 's32[1]{0}', space=sflag, size = 0x4, scoped, tag = 'scoped memory for tpu_custom_call.1']
    #allocation6 [shape = 's32[1]{0}', space=sflag, size = 0x4, scoped, tag = 'scoped memory for tpu_custom_call.1']
    #allocation7 [shape = 'u8[98304]{0}', space=vmem, size = 0x18000, scoped, tag = 'input window, operand 1, single buffered']
    #allocation8 [shape = 's32[1]{0}', space=sflag, size = 0x4, scoped, tag = 'scoped memory for tpu_custom_call.1']
    #allocation9 [shape = 'u8[98304]{0}', space=vmem, size = 0x18000, scoped, tag = 'input window, operand 3, single buffered']
    #allocation10 [shape = 'u8[16384]{0}', space=vmem, size = 0x4000, scoped, tag = 'output window, operand 0, single buffered']
    %10 = vsyncpa [#allocation5], 0
    %11 = vsyncpa [#allocation8], 0
    %12 = vsyncpa [#allocation6], 0
    // Predicated region
    $region2: #{tpu_custom_call.1} parent=1 // pred_check
      _
    $region3: #{tpu_custom_call.1} parent=1 // pred_check_branch
      %14 = sbr.rel (0) target = $region5
    $region4: #{tpu_custom_call.1} parent=1 // pred_region
      %s16 = ssub.s32 512, 512
      %17 = vsyncadd [#allocation5], %s16
      %s18 = sshll.u32 [#allocation4], 4
      %s19 = int_to_ptr.vmem [resolvable:$true] %s18
      %24 = dma.hbm_to_vmem [thread:$0]  %s0, 512, %s19, [#allocation5], 128, 128, 8
    $region5: #{tpu_custom_call.1} parent=1 // pred_fallthru
      _
    // Predicated region
    $region6: #{tpu_custom_call.1} parent=1 // pred_check
      _
    $region7: #{tpu_custom_call.1} parent=1 // pred_check_branch
      %26 = sbr.rel (0) target = $region9
    $region8: #{tpu_custom_call.1} parent=1 // pred_region
      %s28 = ssub.s32 3072, 3072
      %29 = vsyncadd [#allocation8], %s28
      %s30 = sshll.u32 [#allocation7], 4
      %s31 = int_to_ptr.vmem [resolvable:$true] %s30
      %36 = dma.hbm_to_vmem [thread:$0]  %s1, 3072, %s31, [#allocation8], 128, 128, 8
    $region9: #{tpu_custom_call.1} parent=1 // pred_fallthru
      _
    // Predicated region
    $region10: #{tpu_custom_call.1} parent=1 // pred_check
      _
    $region11: #{tpu_custom_call.1} parent=1 // pred_check_branch
      %38 = sbr.rel (0) target = $region13
    $region12: #{tpu_custom_call.1} parent=1 // pred_region
      _
    $region13: #{tpu_custom_call.1} parent=1 // pred_fallthru
      _
    // Predicated region
    $region14: #{tpu_custom_call.1} parent=1 // pred_check
      _
    $region15: #{tpu_custom_call.1} parent=1 // pred_check_branch
      %40 = sbr.rel (0) target = $region17
    $region16: #{tpu_custom_call.1} parent=1 // pred_region
      %s42 = ssub.s32 3072, 3072
      %43 = vsyncadd [#allocation8], %s42
      %s44 = sshll.u32 [#allocation9], 4
      %s45 = int_to_ptr.vmem [resolvable:$true] %s44
      %50 = dma.hbm_to_vmem [thread:$0]  %s3, 3072, %s45, [#allocation8], 128, 128, 8
    $region17: #{tpu_custom_call.1} parent=1 // pred_fallthru
      _
    // Predicated region
    $region18: #{tpu_custom_call.1} parent=1 // pred_check
      _
    $region19: #{tpu_custom_call.1} parent=1 // pred_check_branch
      %52 = sbr.rel (0) target = $region21
    $region20: #{tpu_custom_call.1} parent=1 // pred_region
      _
    $region21: #{tpu_custom_call.1} parent=1 // pred_fallthru
      _
    // Predicated region
    $region22: #{tpu_custom_call.1} parent=1 // pred_check
      _
    $region23: #{tpu_custom_call.1} parent=1 // pred_check_branch
      %54 = sbr.rel (0) target = $region25
    $region24: #{tpu_custom_call.1} parent=1 // pred_region
      %55 = dma.done [#allocation5], 512
    $region25: #{tpu_custom_call.1} parent=1 // pred_fallthru
      _
    // Predicated region
    $region26: #{tpu_custom_call.1} parent=1 // pred_check
      _
    $region27: #{tpu_custom_call.1} parent=1 // pred_check_branch
      %57 = sbr.rel (0) target = $region29
    $region28: #{tpu_custom_call.1} parent=1 // pred_region
      %58 = dma.done [#allocation8], 3072
    $region29: #{tpu_custom_call.1} parent=1 // pred_fallthru
      _
    // Predicated region
    $region30: #{tpu_custom_call.1} parent=1 // pred_check
      _
    $region31: #{tpu_custom_call.1} parent=1 // pred_check_branch
      %60 = sbr.rel (0) target = $region33
    $region32: #{tpu_custom_call.1} parent=1 // pred_region
      %61 = dma.done [#allocation8], 3072
    $region33: #{tpu_custom_call.1} parent=1 // pred_fallthru
      _
    %vm62 = vcmask 516096
    %63 = vst.msk [vmem:[#allocation2] sm:$0x1] %vm62, 0.0
    %64 = vst.msk [vmem:[#allocation2 + $0x18] sm:$0x1] %vm62, 0.0
    %65 = vst.msk [vmem:[#allocation2 + $0x11] sm:$0x1] %vm62, 0.0
    %66 = vst.msk [vmem:[#allocation2 + $0x29] sm:$0x1] %vm62, 0.0
    %67 = vst.msk [vmem:[#allocation3] sm:$0x1] %vm62, 0.0
    %68 = vst.msk [vmem:[#allocation3 + $0x18] sm:$0x1] %vm62, 0.0
    %69 = vst.msk [vmem:[#allocation3 + $0x11] sm:$0x1] %vm62, 0.0
    %70 = vst.msk [vmem:[#allocation3 + $0x29] sm:$0x1] %vm62, 0.0
    %v71 = vld [vmem:[#allocation4] sm:$0xff]
    %v72 = vld [vmem:[#allocation4 + $0x8] sm:$0xff]
    %v73 = vld [vmem:[#allocation4 + $0x10] sm:$0xff]
    %v74 = vld [vmem:[#allocation4 + $0x18] sm:$0xff]
    %vm75 = vcmask 523264
    %76 = vst.msk [vmem:[#allocation2 + $0x1] sm:$0xff] %vm75, %v71
    %77 = vst.msk [vmem:[#allocation2 + $0x9] sm:$0xff] %vm75, %v72
    %78 = vst.msk [vmem:[#allocation2 + $0x19] sm:$0xff] %vm75, %v73
    %79 = vst.msk [vmem:[#allocation2 + $0x21] sm:$0xff] %vm75, %v74
    %v80 = vld [vmem:[#allocation2] sm:$0xff]
    %v81 = vld [vmem:[#allocation2 + $0x8] sm:$0xff]
    %v82 = vld [vmem:[#allocation2 + $0x18] sm:$0xff]
    %v83 = vld [vmem:[#allocation2 + $0x20] sm:$0xff]
    %v84 = vld [vmem:[#allocation7] sm:$0xff]
    %v85 = vld [vmem:[#allocation7 + $0x8] sm:$0xff]
    %v86 = vld [vmem:[#allocation7 + $0x10] sm:$0xff]
    %v87 = vld [vmem:[#allocation7 + $0x18] sm:$0xff]
    %v88 = vld [vmem:[#allocation7 + $0x20] sm:$0xff]
    %v89 = vld [vmem:[#allocation7 + $0x28] sm:$0xff]
    %v90 = vld [vmem:[#allocation7 + $0x30] sm:$0xff]
    %v91 = vld [vmem:[#allocation7 + $0x38] sm:$0xff]
    %v92 = vld [vmem:[#allocation2 + $0x1] sm:$0xff]
    %v93 = vld [vmem:[#allocation2 + $0x9] sm:$0xff]
    %v94 = vld [vmem:[#allocation2 + $0x19] sm:$0xff]
    %v95 = vld [vmem:[#allocation2 + $0x21] sm:$0xff]
    %s96 = scalar_lea.vmem [#allocation7], 64
    %v97 = vld [vmem:[%s96] sm:$0xff]
    %v98 = vld [vmem:[%s96 + $0x8] sm:$0xff]
    %v99 = vld [vmem:[%s96 + $0x10] sm:$0xff]
    %v100 = vld [vmem:[%s96 + $0x18] sm:$0xff]
    %v101 = vld [vmem:[%s96 + $0x20] sm:$0xff]
    %v102 = vld [vmem:[%s96 + $0x28] sm:$0xff]
    %v103 = vld [vmem:[%s96 + $0x30] sm:$0xff]
    %v104 = vld [vmem:[%s96 + $0x38] sm:$0xff]
    %v106 = vsel %vm75, %v92, 0
    %v109 = vsel %vm75, %v93, 0
    %v112 = vsel %vm75, %v94, 0
    %v115 = vsel %vm75, %v95, 0
    %117 = vmatprep.subr.mxu0 0.0
    %118 = vmatpush1.msra.mxu0 %v97
    %119 = vmatprep.subr.mxu0 0.0
    %120 = vmatpush1.msra.mxu0 %v98
    %121 = vmatprep.subr.mxu0 0.0
    %122 = vmatpush1.msra.mxu0 %v99
    %123 = vmatprep.subr.mxu0 0.0
    %124 = vmatpush1.msra.mxu0 %v100
    %125 = vmatprep.subr.mxu0 0.0
    %126 = vmatpush1.msra.mxu0 %v101
    %127 = vmatprep.subr.mxu0 0.0
    %128 = vmatpush1.msra.mxu0 %v102
    %129 = vmatprep.subr.mxu0 0.0
    %130 = vmatpush1.msra.mxu0 %v103
    %131 = vmatprep.subr.mxu0 0.0
    %132 = vmatpush1.msra.mxu0 %v104
    %133 = vmatprep.subr.mxu0 0.0
    %134 = vmatpush1.msra.mxu0 0.0
    %135 = vmatprep.subr.mxu0 0.0
    %136 = vmatpush1.msra.mxu0 0.0
    %137 = vmatprep.subr.mxu0 0.0
    %138 = vmatpush1.msra.mxu0 0.0
    %139 = vmatprep.subr.mxu0 0.0
    %140 = vmatpush1.msra.mxu0 0.0
    %141 = vmatprep.subr.mxu0 0.0
    %142 = vmatpush1.msra.mxu0 0.0
    %143 = vmatprep.subr.mxu0 0.0
    %144 = vmatpush1.msra.mxu0 0.0
    %145 = vmatprep.subr.mxu0 0.0
    %146 = vmatpush1.msra.mxu0 0.0
    %147 = vmatprep.subr.mxu0 0.0
    %148 = vmatpush1.msra.mxu0 0.0
    %149 = vmatprep.subr.mxu0 0.0
    %150 = vmatpush1.msra.mxu0 0.0
    %151 = vmatprep.subr.mxu0 0.0
    %152 = vmatpush1.msra.mxu0 0.0
    %153 = vmatprep.subr.mxu0 0.0
    %154 = vmatpush1.msra.mxu0 0.0
    %155 = vmatprep.subr.mxu0 0.0
    %156 = vmatpush1.msra.mxu0 0.0
    %157 = vmatprep.subr.mxu0 0.0
    %158 = vmatpush1.msra.mxu0 0.0
    %159 = vmatprep.subr.mxu0 0.0
    %160 = vmatpush1.msra.mxu0 0.0
    %161 = vmatprep.subr.mxu0 0.0
    %162 = vmatpush1.msra.mxu0 0.0
    %163 = vmatprep.subr.mxu0 0.0
    %164 = vmatpush1.msra.mxu0 0.0
    %165 = vmatprep.subr.mxu0 0.0
    %166 = vmatpush1.msra.mxu0 0.0
    %167 = vmatprep.subr.mxu0 0.0
    %168 = vmatpush1.msra.mxu0 0.0
    %169 = vmatprep.subr.mxu0 0.0
    %170 = vmatpush1.msra.mxu0 0.0
    %171 = vmatprep.subr.mxu0 0.0
    %172 = vmatpush1.msra.mxu0 0.0
    %173 = vmatprep.subr.mxu0 0.0
    %174 = vmatpush1.msra.mxu0 0.0
    %175 = vmatprep.subr.mxu0 0.0
    %176 = vmatpush1.msra.mxu0 0.0
    %177 = vmatprep.subr.mxu0 0.0
    %178 = vmatpush1.msra.mxu0 0.0
    %179 = vmatprep.subr.mxu0 0.0
    %180 = vmatpush1.msra.mxu0 0.0
    %181 = vmatprep.mubr.f32.mxu0 0.0
    %182 = vmatmul.mubr.f32.gmra.mrb[0].mxu0 %v106
    %v183 = vpop.f32.mrb[0].mxu0
    %v184 = vadd.f32 0.0, %v183
    %v185 = vpop.f32.mrb[0].mxu0
    %186 = vmatprep.mubr.f32.mxu0 0.0
    %187 = vmatmul.mubr.f32.gmra.mrb[0].mxu0 %v109
    %v188 = vpop.f32.mrb[0].mxu0
    %v189 = vadd.f32 0.0, %v188
    %v190 = vpop.f32.mrb[0].mxu0
    %191 = vmatprep.mubr.f32.mxu0 0.0
    %192 = vmatmul.mubr.f32.gmra.mrb[0].mxu0 %v112
    %v193 = vpop.f32.mrb[0].mxu0
    %v194 = vadd.f32 0.0, %v193
    %v195 = vpop.f32.mrb[0].mxu0
    %196 = vmatprep.mubr.f32.mxu0 0.0
    %197 = vmatmul.mubr.f32.gmra.mrb[0].mxu0 %v115
    %v198 = vpop.f32.mrb[0].mxu0
    %v199 = vadd.f32 0.0, %v198
    %v200 = vpop.f32.mrb[0].mxu0
    %201 = vdwg.mxu0
    %v203 = vsel %vm75, %v80, 0
    %v206 = vsel %vm75, %v81, 0
    %v209 = vsel %vm75, %v82, 0
    %v212 = vsel %vm75, %v83, 0
    %214 = vmatprep.subr.mxu0 0.0
    %215 = vmatpush1.msra.mxu0 %v84
    %216 = vmatprep.subr.mxu0 0.0
    %217 = vmatpush1.msra.mxu0 %v85
    %218 = vmatprep.subr.mxu0 0.0
    %219 = vmatpush1.msra.mxu0 %v86
    %220 = vmatprep.subr.mxu0 0.0
    %221 = vmatpush1.msra.mxu0 %v87
    %222 = vmatprep.subr.mxu0 0.0
    %223 = vmatpush1.msra.mxu0 %v88
    %224 = vmatprep.subr.mxu0 0.0
    %225 = vmatpush1.msra.mxu0 %v89
    %226 = vmatprep.subr.mxu0 0.0
    %227 = vmatpush1.msra.mxu0 %v90
    %228 = vmatprep.subr.mxu0 0.0
    %229 = vmatpush1.msra.mxu0 %v91
    %230 = vmatprep.subr.mxu0 0.0
    %231 = vmatpush1.msra.mxu0 0.0
    %232 = vmatprep.subr.mxu0 0.0
    %233 = vmatpush1.msra.mxu0 0.0
    %234 = vmatprep.subr.mxu0 0.0
    %235 = vmatpush1.msra.mxu0 0.0
    %236 = vmatprep.subr.mxu0 0.0
    %237 = vmatpush1.msra.mxu0 0.0
    %238 = vmatprep.subr.mxu0 0.0
    %239 = vmatpush1.msra.mxu0 0.0
    %240 = vmatprep.subr.mxu0 0.0
    %241 = vmatpush1.msra.mxu0 0.0
    %242 = vmatprep.subr.mxu0 0.0
    %243 = vmatpush1.msra.mxu0 0.0
    %244 = vmatprep.subr.mxu0 0.0
    %245 = vmatpush1.msra.mxu0 0.0
    %246 = vmatprep.subr.mxu0 0.0
    %247 = vmatpush1.msra.mxu0 0.0
    %248 = vmatprep.subr.mxu0 0.0
    %249 = vmatpush1.msra.mxu0 0.0
    %250 = vmatprep.subr.mxu0 0.0
    %251 = vmatpush1.msra.mxu0 0.0
    %252 = vmatprep.subr.mxu0 0.0
    %253 = vmatpush1.msra.mxu0 0.0
    %254 = vmatprep.subr.mxu0 0.0
    %255 = vmatpush1.msra.mxu0 0.0
    %256 = vmatprep.subr.mxu0 0.0
    %257 = vmatpush1.msra.mxu0 0.0
    %258 = vmatprep.subr.mxu0 0.0
    %259 = vmatpush1.msra.mxu0 0.0
    %260 = vmatprep.subr.mxu0 0.0
    %261 = vmatpush1.msra.mxu0 0.0
    %262 = vmatprep.subr.mxu0 0.0
    %263 = vmatpush1.msra.mxu0 0.0
    %264 = vmatprep.subr.mxu0 0.0
    %265 = vmatpush1.msra.mxu0 0.0
    %266 = vmatprep.subr.mxu0 0.0
    %267 = vmatpush1.msra.mxu0 0.0
    %268 = vmatprep.subr.mxu0 0.0
    %269 = vmatpush1.msra.mxu0 0.0
    %270 = vmatprep.subr.mxu0 0.0
    %271 = vmatpush1.msra.mxu0 0.0
    %272 = vmatprep.subr.mxu0 0.0
    %273 = vmatpush1.msra.mxu0 0.0
    %274 = vmatprep.subr.mxu0 0.0
    %275 = vmatpush1.msra.mxu0 0.0
    %276 = vmatprep.subr.mxu0 0.0
    %277 = vmatpush1.msra.mxu0 0.0
    %278 = vmatprep.mubr.f32.mxu0 0.0
    %279 = vmatmul.mubr.f32.gmra.mrb[0].mxu0 %v203
    %v280 = vpop.f32.mrb[0].mxu0
    %v281 = vadd.f32 %v184, %v280
    %v282 = vpop.f32.mrb[0].mxu0
    %283 = vmatprep.mubr.f32.mxu0 0.0
    %284 = vmatmul.mubr.f32.gmra.mrb[0].mxu0 %v206
    %v285 = vpop.f32.mrb[0].mxu0
    %v286 = vadd.f32 %v189, %v285
    %v287 = vpop.f32.mrb[0].mxu0
    %288 = vmatprep.mubr.f32.mxu0 0.0
    %289 = vmatmul.mubr.f32.gmra.mrb[0].mxu0 %v209
    %v290 = vpop.f32.mrb[0].mxu0
    %v291 = vadd.f32 %v194, %v290
    %v292 = vpop.f32.mrb[0].mxu0
    %293 = vmatprep.mubr.f32.mxu0 0.0
    %294 = vmatmul.mubr.f32.gmra.mrb[0].mxu0 %v212
    %v295 = vpop.f32.mrb[0].mxu0
    %v296 = vadd.f32 %v199, %v295
    %v297 = vpop.f32.mrb[0].mxu0
    %298 = vdwg.mxu0
    %v299 = vld [vmem:[#allocation2 + $0x2] sm:$0xff]
    %v300 = vld [vmem:[#allocation2 + $0xa] sm:$0xff]
    %v301 = vld [vmem:[#allocation2 + $0x1a] sm:$0xff]
    %v302 = vld [vmem:[#allocation2 + $0x22] sm:$0xff]
    %s303 = scalar_lea.vmem [#allocation7], 128
    %v304 = vld [vmem:[%s303] sm:$0xff]
    %v305 = vld [vmem:[%s303 + $0x8] sm:$0xff]
    %v306 = vld [vmem:[%s303 + $0x10] sm:$0xff]
    %v307 = vld [vmem:[%s303 + $0x18] sm:$0xff]
    %v308 = vld [vmem:[%s303 + $0x20] sm:$0xff]
    %v309 = vld [vmem:[%s303 + $0x28] sm:$0xff]
    %v310 = vld [vmem:[%s303 + $0x30] sm:$0xff]
    %v311 = vld [vmem:[%s303 + $0x38] sm:$0xff]
    %v313 = vsel %vm75, %v299, 0
    %v316 = vsel %vm75, %v300, 0
    %v319 = vsel %vm75, %v301, 0
    %v322 = vsel %vm75, %v302, 0
    %324 = vmatprep.subr.mxu0 0.0
    %325 = vmatpush1.msra.mxu0 %v304
    %326 = vmatprep.subr.mxu0 0.0
    %327 = vmatpush1.msra.mxu0 %v305
    %328 = vmatprep.subr.mxu0 0.0
    %329 = vmatpush1.msra.mxu0 %v306
    %330 = vmatprep.subr.mxu0 0.0
    %331 = vmatpush1.msra.mxu0 %v307
    %332 = vmatprep.subr.mxu0 0.0
    %333 = vmatpush1.msra.mxu0 %v308
    %334 = vmatprep.subr.mxu0 0.0
    %335 = vmatpush1.msra.mxu0 %v309
    %336 = vmatprep.subr.mxu0 0.0
    %337 = vmatpush1.msra.mxu0 %v310
    %338 = vmatprep.subr.mxu0 0.0
    %339 = vmatpush1.msra.mxu0 %v311
    %340 = vmatprep.subr.mxu0 0.0
    %341 = vmatpush1.msra.mxu0 0.0
    %342 = vmatprep.subr.mxu0 0.0
    %343 = vmatpush1.msra.mxu0 0.0
    %344 = vmatprep.subr.mxu0 0.0
    %345 = vmatpush1.msra.mxu0 0.0
    %346 = vmatprep.subr.mxu0 0.0
    %347 = vmatpush1.msra.mxu0 0.0
    %348 = vmatprep.subr.mxu0 0.0
    %349 = vmatpush1.msra.mxu0 0.0
    %350 = vmatprep.subr.mxu0 0.0
    %351 = vmatpush1.msra.mxu0 0.0
    %352 = vmatprep.subr.mxu0 0.0
    %353 = vmatpush1.msra.mxu0 0.0
    %354 = vmatprep.subr.mxu0 0.0
    %355 = vmatpush1.msra.mxu0 0.0
    %356 = vmatprep.subr.mxu0 0.0
    %357 = vmatpush1.msra.mxu0 0.0
    %358 = vmatprep.subr.mxu0 0.0
    %359 = vmatpush1.msra.mxu0 0.0
    %360 = vmatprep.subr.mxu0 0.0
    %361 = vmatpush1.msra.mxu0 0.0
    %362 = vmatprep.subr.mxu0 0.0
    %363 = vmatpush1.msra.mxu0 0.0
    %364 = vmatprep.subr.mxu0 0.0
    %365 = vmatpush1.msra.mxu0 0.0
    %366 = vmatprep.subr.mxu0 0.0
    %367 = vmatpush1.msra.mxu0 0.0
    %368 = vmatprep.subr.mxu0 0.0
    %369 = vmatpush1.msra.mxu0 0.0
    %370 = vmatprep.subr.mxu0 0.0
    %371 = vmatpush1.msra.mxu0 0.0
    %372 = vmatprep.subr.mxu0 0.0
    %373 = vmatpush1.msra.mxu0 0.0
    %374 = vmatprep.subr.mxu0 0.0
    %375 = vmatpush1.msra.mxu0 0.0
    %376 = vmatprep.subr.mxu0 0.0
    %377 = vmatpush1.msra.mxu0 0.0
    %378 = vmatprep.subr.mxu0 0.0
    %379 = vmatpush1.msra.mxu0 0.0
    %380 = vmatprep.subr.mxu0 0.0
    %381 = vmatpush1.msra.mxu0 0.0
    %382 = vmatprep.subr.mxu0 0.0
    %383 = vmatpush1.msra.mxu0 0.0
    %384 = vmatprep.subr.mxu0 0.0
    %385 = vmatpush1.msra.mxu0 0.0
    %386 = vmatprep.subr.mxu0 0.0
    %387 = vmatpush1.msra.mxu0 0.0
    %388 = vmatprep.mubr.f32.mxu0 0.0
    %389 = vmatmul.mubr.f32.gmra.mrb[0].mxu0 %v313
    %v390 = vpop.f32.mrb[0].mxu0
    %v391 = vadd.f32 0.0, %v390
    %v392 = vpop.f32.mrb[0].mxu0
    %393 = vmatprep.mubr.f32.mxu0 0.0
    %394 = vmatmul.mubr.f32.gmra.mrb[0].mxu0 %v316
    %v395 = vpop.f32.mrb[0].mxu0
    %v396 = vadd.f32 0.0, %v395
    %v397 = vpop.f32.mrb[0].mxu0
    %398 = vmatprep.mubr.f32.mxu0 0.0
    %399 = vmatmul.mubr.f32.gmra.mrb[0].mxu0 %v319
    %v400 = vpop.f32.mrb[0].mxu0
    %v401 = vadd.f32 0.0, %v400
    %v402 = vpop.f32.mrb[0].mxu0
    %403 = vmatprep.mubr.f32.mxu0 0.0
    %404 = vmatmul.mubr.f32.gmra.mrb[0].mxu0 %v322
    %v405 = vpop.f32.mrb[0].mxu0
    %v406 = vadd.f32 0.0, %v405
    %v407 = vpop.f32.mrb[0].mxu0
    %408 = vdwg.mxu0
    %v409 = vadd.f32 %v281, %v391
    %v410 = vadd.f32 %v286, %v396
    %v411 = vadd.f32 %v291, %v401
    %v412 = vadd.f32 %v296, %v406
    %v413 = vld [vmem:[%s2] sm:$0x1]
    %v415 = vlaneseq
    %v416 = vshrl.u32 %v415, 7
    %v417 = vsub.s32 0, %v416
    %v418 = vrot.slane %v413, %v417
    %v420 = vadd.f32 %v409, %v418
    %v421 = vadd.f32 %v410, %v418
    %v422 = vadd.f32 %v411, %v418
    %v423 = vadd.f32 %v412, %v418
    %v424 = vmax.f32 %v420, 0.0
    %v425 = vmax.f32 %v421, 0.0
    %v426 = vmax.f32 %v422, 0.0
    %v427 = vmax.f32 %v423, 0.0
    %428 = vst.msk [vmem:[#allocation3 + $0x1] sm:$0xff] %vm75, %v424
    %429 = vst.msk [vmem:[#allocation3 + $0x9] sm:$0xff] %vm75, %v425
    %430 = vst.msk [vmem:[#allocation3 + $0x19] sm:$0xff] %vm75, %v426
    %431 = vst.msk [vmem:[#allocation3 + $0x21] sm:$0xff] %vm75, %v427
    %v432 = vld [vmem:[#allocation3] sm:$0xff]
    %v433 = vld [vmem:[#allocation3 + $0x8] sm:$0xff]
    %v434 = vld [vmem:[#allocation3 + $0x18] sm:$0xff]
    %v435 = vld [vmem:[#allocation3 + $0x20] sm:$0xff]
    %v436 = vld [vmem:[#allocation9] sm:$0xff]
    %v437 = vld [vmem:[#allocation9 + $0x8] sm:$0xff]
    %v438 = vld [vmem:[#allocation9 + $0x10] sm:$0xff]
    %v439 = vld [vmem:[#allocation9 + $0x18] sm:$0xff]
    %v440 = vld [vmem:[#allocation9 + $0x20] sm:$0xff]
    %v441 = vld [vmem:[#allocation9 + $0x28] sm:$0xff]
    %v442 = vld [vmem:[#allocation9 + $0x30] sm:$0xff]
    %v443 = vld [vmem:[#allocation9 + $0x38] sm:$0xff]
    %v444 = vld [vmem:[#allocation3 + $0x1] sm:$0xff]
    %v445 = vld [vmem:[#allocation3 + $0x9] sm:$0xff]
    %v446 = vld [vmem:[#allocation3 + $0x19] sm:$0xff]
    %v447 = vld [vmem:[#allocation3 + $0x21] sm:$0xff]
    %s448 = scalar_lea.vmem [#allocation9], 64
    %v449 = vld [vmem:[%s448] sm:$0xff]
    %v450 = vld [vmem:[%s448 + $0x8] sm:$0xff]
    %v451 = vld [vmem:[%s448 + $0x10] sm:$0xff]
    %v452 = vld [vmem:[%s448 + $0x18] sm:$0xff]
    %v453 = vld [vmem:[%s448 + $0x20] sm:$0xff]
    %v454 = vld [vmem:[%s448 + $0x28] sm:$0xff]
    %v455 = vld [vmem:[%s448 + $0x30] sm:$0xff]
    %v456 = vld [vmem:[%s448 + $0x38] sm:$0xff]
    %v458 = vsel %vm75, %v444, 0
    %v461 = vsel %vm75, %v445, 0
    %v464 = vsel %vm75, %v446, 0
    %v467 = vsel %vm75, %v447, 0
    %469 = vmatprep.subr.mxu0 0.0
    %470 = vmatpush1.msra.mxu0 %v449
    %471 = vmatprep.subr.mxu0 0.0
    %472 = vmatpush1.msra.mxu0 %v450
    %473 = vmatprep.subr.mxu0 0.0
    %474 = vmatpush1.msra.mxu0 %v451
    %475 = vmatprep.subr.mxu0 0.0
    %476 = vmatpush1.msra.mxu0 %v452
    %477 = vmatprep.subr.mxu0 0.0
    %478 = vmatpush1.msra.mxu0 %v453
    %479 = vmatprep.subr.mxu0 0.0
    %480 = vmatpush1.msra.mxu0 %v454
    %481 = vmatprep.subr.mxu0 0.0
    %482 = vmatpush1.msra.mxu0 %v455
    %483 = vmatprep.subr.mxu0 0.0
    %484 = vmatpush1.msra.mxu0 %v456
    %485 = vmatprep.subr.mxu0 0.0
    %486 = vmatpush1.msra.mxu0 0.0
    %487 = vmatprep.subr.mxu0 0.0
    %488 = vmatpush1.msra.mxu0 0.0
    %489 = vmatprep.subr.mxu0 0.0
    %490 = vmatpush1.msra.mxu0 0.0
    %491 = vmatprep.subr.mxu0 0.0
    %492 = vmatpush1.msra.mxu0 0.0
    %493 = vmatprep.subr.mxu0 0.0
    %494 = vmatpush1.msra.mxu0 0.0
    %495 = vmatprep.subr.mxu0 0.0
    %496 = vmatpush1.msra.mxu0 0.0
    %497 = vmatprep.subr.mxu0 0.0
    %498 = vmatpush1.msra.mxu0 0.0
    %499 = vmatprep.subr.mxu0 0.0
    %500 = vmatpush1.msra.mxu0 0.0
    %501 = vmatprep.subr.mxu0 0.0
    %502 = vmatpush1.msra.mxu0 0.0
    %503 = vmatprep.subr.mxu0 0.0
    %504 = vmatpush1.msra.mxu0 0.0
    %505 = vmatprep.subr.mxu0 0.0
    %506 = vmatpush1.msra.mxu0 0.0
    %507 = vmatprep.subr.mxu0 0.0
    %508 = vmatpush1.msra.mxu0 0.0
    %509 = vmatprep.subr.mxu0 0.0
    %510 = vmatpush1.msra.mxu0 0.0
    %511 = vmatprep.subr.mxu0 0.0
    %512 = vmatpush1.msra.mxu0 0.0
    %513 = vmatprep.subr.mxu0 0.0
    %514 = vmatpush1.msra.mxu0 0.0
    %515 = vmatprep.subr.mxu0 0.0
    %516 = vmatpush1.msra.mxu0 0.0
    %517 = vmatprep.subr.mxu0 0.0
    %518 = vmatpush1.msra.mxu0 0.0
    %519 = vmatprep.subr.mxu0 0.0
    %520 = vmatpush1.msra.mxu0 0.0
    %521 = vmatprep.subr.mxu0 0.0
    %522 = vmatpush1.msra.mxu0 0.0
    %523 = vmatprep.subr.mxu0 0.0
    %524 = vmatpush1.msra.mxu0 0.0
    %525 = vmatprep.subr.mxu0 0.0
    %526 = vmatpush1.msra.mxu0 0.0
    %527 = vmatprep.subr.mxu0 0.0
    %528 = vmatpush1.msra.mxu0 0.0
    %529 = vmatprep.subr.mxu0 0.0
    %530 = vmatpush1.msra.mxu0 0.0
    %531 = vmatprep.subr.mxu0 0.0
    %532 = vmatpush1.msra.mxu0 0.0
    %533 = vmatprep.mubr.f32.mxu0 0.0
    %534 = vmatmul.mubr.f32.gmra.mrb[0].mxu0 %v458
    %v535 = vpop.f32.mrb[0].mxu0
    %v536 = vadd.f32 0.0, %v535
    %v537 = vpop.f32.mrb[0].mxu0
    %538 = vmatprep.mubr.f32.mxu0 0.0
    %539 = vmatmul.mubr.f32.gmra.mrb[0].mxu0 %v461
    %v540 = vpop.f32.mrb[0].mxu0
    %v541 = vadd.f32 0.0, %v540
    %v542 = vpop.f32.mrb[0].mxu0
    %543 = vmatprep.mubr.f32.mxu0 0.0
    %544 = vmatmul.mubr.f32.gmra.mrb[0].mxu0 %v464
    %v545 = vpop.f32.mrb[0].mxu0
    %v546 = vadd.f32 0.0, %v545
    %v547 = vpop.f32.mrb[0].mxu0
    %548 = vmatprep.mubr.f32.mxu0 0.0
    %549 = vmatmul.mubr.f32.gmra.mrb[0].mxu0 %v467
    %v550 = vpop.f32.mrb[0].mxu0
    %v551 = vadd.f32 0.0, %v550
    %v552 = vpop.f32.mrb[0].mxu0
    %553 = vdwg.mxu0
    %v555 = vsel %vm75, %v432, 0
    %v558 = vsel %vm75, %v433, 0
    %v561 = vsel %vm75, %v434, 0
    %v564 = vsel %vm75, %v435, 0
    %566 = vmatprep.subr.mxu0 0.0
    %567 = vmatpush1.msra.mxu0 %v436
    %568 = vmatprep.subr.mxu0 0.0
    %569 = vmatpush1.msra.mxu0 %v437
    %570 = vmatprep.subr.mxu0 0.0
    %571 = vmatpush1.msra.mxu0 %v438
    %572 = vmatprep.subr.mxu0 0.0
    %573 = vmatpush1.msra.mxu0 %v439
    %574 = vmatprep.subr.mxu0 0.0
    %575 = vmatpush1.msra.mxu0 %v440
    %576 = vmatprep.subr.mxu0 0.0
    %577 = vmatpush1.msra.mxu0 %v441
    %578 = vmatprep.subr.mxu0 0.0
    %579 = vmatpush1.msra.mxu0 %v442
    %580 = vmatprep.subr.mxu0 0.0
    %581 = vmatpush1.msra.mxu0 %v443
    %582 = vmatprep.subr.mxu0 0.0
    %583 = vmatpush1.msra.mxu0 0.0
    %584 = vmatprep.subr.mxu0 0.0
    %585 = vmatpush1.msra.mxu0 0.0
    %586 = vmatprep.subr.mxu0 0.0
    %587 = vmatpush1.msra.mxu0 0.0
    %588 = vmatprep.subr.mxu0 0.0
    %589 = vmatpush1.msra.mxu0 0.0
    %590 = vmatprep.subr.mxu0 0.0
    %591 = vmatpush1.msra.mxu0 0.0
    %592 = vmatprep.subr.mxu0 0.0
    %593 = vmatpush1.msra.mxu0 0.0
    %594 = vmatprep.subr.mxu0 0.0
    %595 = vmatpush1.msra.mxu0 0.0
    %596 = vmatprep.subr.mxu0 0.0
    %597 = vmatpush1.msra.mxu0 0.0
    %598 = vmatprep.subr.mxu0 0.0
    %599 = vmatpush1.msra.mxu0 0.0
    %600 = vmatprep.subr.mxu0 0.0
    %601 = vmatpush1.msra.mxu0 0.0
    %602 = vmatprep.subr.mxu0 0.0
    %603 = vmatpush1.msra.mxu0 0.0
    %604 = vmatprep.subr.mxu0 0.0
    %605 = vmatpush1.msra.mxu0 0.0
    %606 = vmatprep.subr.mxu0 0.0
    %607 = vmatpush1.msra.mxu0 0.0
    %608 = vmatprep.subr.mxu0 0.0
    %609 = vmatpush1.msra.mxu0 0.0
    %610 = vmatprep.subr.mxu0 0.0
    %611 = vmatpush1.msra.mxu0 0.0
    %612 = vmatprep.subr.mxu0 0.0
    %613 = vmatpush1.msra.mxu0 0.0
    %614 = vmatprep.subr.mxu0 0.0
    %615 = vmatpush1.msra.mxu0 0.0
    %616 = vmatprep.subr.mxu0 0.0
    %617 = vmatpush1.msra.mxu0 0.0
    %618 = vmatprep.subr.mxu0 0.0
    %619 = vmatpush1.msra.mxu0 0.0
    %620 = vmatprep.subr.mxu0 0.0
    %621 = vmatpush1.msra.mxu0 0.0
    %622 = vmatprep.subr.mxu0 0.0
    %623 = vmatpush1.msra.mxu0 0.0
    %624 = vmatprep.subr.mxu0 0.0
    %625 = vmatpush1.msra.mxu0 0.0
    %626 = vmatprep.subr.mxu0 0.0
    %627 = vmatpush1.msra.mxu0 0.0
    %628 = vmatprep.subr.mxu0 0.0
    %629 = vmatpush1.msra.mxu0 0.0
    %630 = vmatprep.mubr.f32.mxu0 0.0
    %631 = vmatmul.mubr.f32.gmra.mrb[0].mxu0 %v555
    %v632 = vpop.f32.mrb[0].mxu0
    %v633 = vadd.f32 %v536, %v632
    %v634 = vpop.f32.mrb[0].mxu0
    %635 = vmatprep.mubr.f32.mxu0 0.0
    %636 = vmatmul.mubr.f32.gmra.mrb[0].mxu0 %v558
    %v637 = vpop.f32.mrb[0].mxu0
    %v638 = vadd.f32 %v541, %v637
    %v639 = vpop.f32.mrb[0].mxu0
    %640 = vmatprep.mubr.f32.mxu0 0.0
    %641 = vmatmul.mubr.f32.gmra.mrb[0].mxu0 %v561
    %v642 = vpop.f32.mrb[0].mxu0
    %v643 = vadd.f32 %v546, %v642
    %v644 = vpop.f32.mrb[0].mxu0
    %645 = vmatprep.mubr.f32.mxu0 0.0
    %646 = vmatmul.mubr.f32.gmra.mrb[0].mxu0 %v564
    %v647 = vpop.f32.mrb[0].mxu0
    %v648 = vadd.f32 %v551, %v647
    %v649 = vpop.f32.mrb[0].mxu0
    %650 = vdwg.mxu0
    %v651 = vld [vmem:[#allocation3 + $0x2] sm:$0xff]
    %v652 = vld [vmem:[#allocation3 + $0xa] sm:$0xff]
    %v653 = vld [vmem:[#allocation3 + $0x1a] sm:$0xff]
    %v654 = vld [vmem:[#allocation3 + $0x22] sm:$0xff]
    %s655 = scalar_lea.vmem [#allocation9], 128
    %v656 = vld [vmem:[%s655] sm:$0xff]
    %v657 = vld [vmem:[%s655 + $0x8] sm:$0xff]
    %v658 = vld [vmem:[%s655 + $0x10] sm:$0xff]
    %v659 = vld [vmem:[%s655 + $0x18] sm:$0xff]
    %v660 = vld [vmem:[%s655 + $0x20] sm:$0xff]
    %v661 = vld [vmem:[%s655 + $0x28] sm:$0xff]
    %v662 = vld [vmem:[%s655 + $0x30] sm:$0xff]
    %v663 = vld [vmem:[%s655 + $0x38] sm:$0xff]
    %v665 = vsel %vm75, %v651, 0
    %v668 = vsel %vm75, %v652, 0
    %v671 = vsel %vm75, %v653, 0
    %v674 = vsel %vm75, %v654, 0
    %676 = vmatprep.subr.mxu0 0.0
    %677 = vmatpush1.msra.mxu0 %v656
    %678 = vmatprep.subr.mxu0 0.0
    %679 = vmatpush1.msra.mxu0 %v657
    %680 = vmatprep.subr.mxu0 0.0
    %681 = vmatpush1.msra.mxu0 %v658
    %682 = vmatprep.subr.mxu0 0.0
    %683 = vmatpush1.msra.mxu0 %v659
    %684 = vmatprep.subr.mxu0 0.0
    %685 = vmatpush1.msra.mxu0 %v660
    %686 = vmatprep.subr.mxu0 0.0
    %687 = vmatpush1.msra.mxu0 %v661
    %688 = vmatprep.subr.mxu0 0.0
    %689 = vmatpush1.msra.mxu0 %v662
    %690 = vmatprep.subr.mxu0 0.0
    %691 = vmatpush1.msra.mxu0 %v663
    %692 = vmatprep.subr.mxu0 0.0
    %693 = vmatpush1.msra.mxu0 0.0
    %694 = vmatprep.subr.mxu0 0.0
    %695 = vmatpush1.msra.mxu0 0.0
    %696 = vmatprep.subr.mxu0 0.0
    %697 = vmatpush1.msra.mxu0 0.0
    %698 = vmatprep.subr.mxu0 0.0
    %699 = vmatpush1.msra.mxu0 0.0
    %700 = vmatprep.subr.mxu0 0.0
    %701 = vmatpush1.msra.mxu0 0.0
    %702 = vmatprep.subr.mxu0 0.0
    %703 = vmatpush1.msra.mxu0 0.0
    %704 = vmatprep.subr.mxu0 0.0
    %705 = vmatpush1.msra.mxu0 0.0
    %706 = vmatprep.subr.mxu0 0.0
    %707 = vmatpush1.msra.mxu0 0.0
    %708 = vmatprep.subr.mxu0 0.0
    %709 = vmatpush1.msra.mxu0 0.0
    %710 = vmatprep.subr.mxu0 0.0
    %711 = vmatpush1.msra.mxu0 0.0
    %712 = vmatprep.subr.mxu0 0.0
    %713 = vmatpush1.msra.mxu0 0.0
    %714 = vmatprep.subr.mxu0 0.0
    %715 = vmatpush1.msra.mxu0 0.0
    %716 = vmatprep.subr.mxu0 0.0
    %717 = vmatpush1.msra.mxu0 0.0
    %718 = vmatprep.subr.mxu0 0.0
    %719 = vmatpush1.msra.mxu0 0.0
    %720 = vmatprep.subr.mxu0 0.0
    %721 = vmatpush1.msra.mxu0 0.0
    %722 = vmatprep.subr.mxu0 0.0
    %723 = vmatpush1.msra.mxu0 0.0
    %724 = vmatprep.subr.mxu0 0.0
    %725 = vmatpush1.msra.mxu0 0.0
    %726 = vmatprep.subr.mxu0 0.0
    %727 = vmatpush1.msra.mxu0 0.0
    %728 = vmatprep.subr.mxu0 0.0
    %729 = vmatpush1.msra.mxu0 0.0
    %730 = vmatprep.subr.mxu0 0.0
    %731 = vmatpush1.msra.mxu0 0.0
    %732 = vmatprep.subr.mxu0 0.0
    %733 = vmatpush1.msra.mxu0 0.0
    %734 = vmatprep.subr.mxu0 0.0
    %735 = vmatpush1.msra.mxu0 0.0
    %736 = vmatprep.subr.mxu0 0.0
    %737 = vmatpush1.msra.mxu0 0.0
    %738 = vmatprep.subr.mxu0 0.0
    %739 = vmatpush1.msra.mxu0 0.0
    %740 = vmatprep.mubr.f32.mxu0 0.0
    %741 = vmatmul.mubr.f32.gmra.mrb[0].mxu0 %v665
    %v742 = vpop.f32.mrb[0].mxu0
    %v743 = vadd.f32 0.0, %v742
    %v744 = vpop.f32.mrb[0].mxu0
    %745 = vmatprep.mubr.f32.mxu0 0.0
    %746 = vmatmul.mubr.f32.gmra.mrb[0].mxu0 %v668
    %v747 = vpop.f32.mrb[0].mxu0
    %v748 = vadd.f32 0.0, %v747
    %v749 = vpop.f32.mrb[0].mxu0
    %750 = vmatprep.mubr.f32.mxu0 0.0
    %751 = vmatmul.mubr.f32.gmra.mrb[0].mxu0 %v671
    %v752 = vpop.f32.mrb[0].mxu0
    %v753 = vadd.f32 0.0, %v752
    %v754 = vpop.f32.mrb[0].mxu0
    %755 = vmatprep.mubr.f32.mxu0 0.0
    %756 = vmatmul.mubr.f32.gmra.mrb[0].mxu0 %v674
    %v757 = vpop.f32.mrb[0].mxu0
    %v758 = vadd.f32 0.0, %v757
    %v759 = vpop.f32.mrb[0].mxu0
    %760 = vdwg.mxu0
    %v761 = vadd.f32 %v633, %v743
    %v762 = vadd.f32 %v638, %v748
    %v763 = vadd.f32 %v643, %v753
    %v764 = vadd.f32 %v648, %v758
    %v765 = vld [vmem:[%s4] sm:$0x1]
    %v767 = vlaneseq
    %v768 = vshrl.u32 %v767, 7
    %v769 = vsub.s32 0, %v768
    %v770 = vrot.slane %v765, %v769
    %v772 = vadd.f32 %v761, %v770
    %v773 = vadd.f32 %v762, %v770
    %v774 = vadd.f32 %v763, %v770
    %v775 = vadd.f32 %v764, %v770
    %v776 = vadd.f32 %v772, %v71
    %v777 = vadd.f32 %v773, %v72
    %v778 = vadd.f32 %v774, %v73
    %v779 = vadd.f32 %v775, %v74
    %780 = vst.msk [vmem:[#allocation10] sm:$0xff] %vm75, %v776
    %781 = vst.msk [vmem:[#allocation10 + $0x8] sm:$0xff] %vm75, %v777
    %782 = vst.msk [vmem:[#allocation10 + $0x10] sm:$0xff] %vm75, %v778
    %783 = vst.msk [vmem:[#allocation10 + $0x18] sm:$0xff] %vm75, %v779
    // Predicated region
    $region34: #{tpu_custom_call.1} parent=1 // pred_check
      _
    $region35: #{tpu_custom_call.1} parent=1 // pred_check_branch
      %785 = sbr.rel (0) target = $region37
    $region36: #{tpu_custom_call.1} parent=1 // pred_region
      %s787 = ssub.s32 512, 512
      %788 = vsyncadd [#allocation6], %s787
      %s789 = sshll.u32 [#allocation10], 4
      %s790 = int_to_ptr.vmem [resolvable:$true] %s789
      %795 = dma.vmem_to_hbm [thread:$0]  %s790, 512, %s5, [#allocation6], 128, 128, 8
    $region37: #{tpu_custom_call.1} parent=1 // pred_fallthru
      _
    // Predicated region
    $region38: #{tpu_custom_call.1} parent=1 // pred_check
      _
    $region39: #{tpu_custom_call.1} parent=1 // pred_check_branch
      %797 = sbr.rel (0) target = $region41
    $region40: #{tpu_custom_call.1} parent=1 // pred_region
      %798 = dma.done [#allocation6], 512
    $region41: #{tpu_custom_call.1} parent=1 // pred_fallthru
      _
    %799 = vsyncpa [#allocation5], 1
    %800 = vsyncpa [#allocation8], 1
    %801 = vsyncpa [#allocation6], 1

</llo_original>
